<compile_context>
chip_gen: v5e
topology: v5e:2x2
jax: 0.10.0
libtpu: 0.0.40
codegen_flags: <defaults>
</compile_context>

<pallas_src>
import math
from typing import NamedTuple

import jax
import jax.numpy as jnp
from jax.experimental import pallas as pl
from jax.experimental.pallas import tpu as pltpu


# ---------------------------------------------------------------------------
# Helpers
# ---------------------------------------------------------------------------
def _round_up(x, m):
    return ((x + m - 1) // m) * m


def _cdiv(a, b):
    return (a + b - 1) // b


def _gelu_tanh(x):
    # Exact semantics of torch.nn.GELU(approximate='tanh'), computed in f32.
    c = math.sqrt(2.0 / math.pi)
    return 0.5 * x * (1.0 + jnp.tanh(c * (x + 0.044715 * x * x * x)))


# ---------------------------------------------------------------------------
# Generation-aware configuration (tile targets + VMEM budgets)
# ---------------------------------------------------------------------------
def _device_config():
    kind = ""
    try:
        kind = jax.devices()[0].device_kind.lower()
    except Exception:
        pass
    if "v6" in kind:              # v6e: 128 MiB VMEM, 256x256 MXU, 1 TC
        cfg = dict(tm=1024, th=512, mxu=256, cores=1,
                   vmem_phys=128 << 20, budget=100 << 20)
    elif "v5 lite" in kind or "v5e" in kind or "v5lite" in kind:
        cfg = dict(tm=512, th=512, mxu=128, cores=1,   # v5e: 128x128 MXU
                   vmem_phys=128 << 20, budget=96 << 20)
    elif "v7" in kind or "tpu7" in kind:               # v7x: 64 MiB VMEM, 2 TCs
        cfg = dict(tm=512, th=256, mxu=256, cores=2,
                   vmem_phys=64 << 20, budget=48 << 20)
    else:                                              # v4 / v5p / unknown: conservative
        cfg = dict(tm=512, th=512, mxu=128, cores=1,
                   vmem_phys=64 << 20, budget=48 << 20)
    try:  # refine with the real physical VMEM when the query is available
        phys = int(pltpu.get_tpu_info().vmem_capacity_bytes)
        cfg["vmem_phys"] = phys
        cfg["budget"] = min(cfg["budget"], phys - (16 << 20))
    except Exception:
        pass
    return cfg


def _vmem_footprint(tm, th, c_pad, x_it, o_it, w_it):
    """Conservative VMEM bytes for one grid step (double-buffered pipelining)."""
    return (2 * tm * c_pad * x_it          # x row tile (2 buffers)
            + 2 * tm * c_pad * o_it        # output row tile (2 buffers)
            + tm * c_pad * 4               # f32 accumulator scratch
            + 2 * c_pad * th * w_it        # W_fc tile (2 buffers)
            + 2 * th * c_pad * w_it        # W_proj tile (2 buffers)
            + 2 * tm * th * 4              # h / GELU(h) f32 intermediates
            + 2 * th * 4 + 2 * c_pad * 4)  # biases


def _choose_tiles(m, c_pad, h_pad, x_it, o_it, w_it, cfg):
    budget, mxu = cfg["budget"], cfg["mxu"]

    def fits(tm_, th_):
        return _vmem_footprint(tm_, th_, c_pad, x_it, o_it, w_it) <= budget

    # ---- row tile: as large as the generation target / VMEM allow ----
    if cfg["cores"] >= 2 and m <= cfg["tm"] and m >= 2 * mxu:
        # v7x has 2 TensorCores: make sure the "parallel" row axis has >= 2 tiles.
        tm = _round_up(_cdiv(m, 2), mxu)
    elif m >= cfg["tm"]:
        tm = _round_up(cfg["tm"], mxu)
    else:
        tm = max(16, _round_up(m, 16))     # small M: one (padded) row tile
        # TODO(synk): for decode-sized M on 2-TC parts, add a parallel grid axis
        # over output columns of C instead of leaving one TensorCore idle.

    # ---- hidden tile: prefer fully-resident weights (th == H) ----
    th_cands = [t for t in range(h_pad, 0, -128) if h_pad % t == 0] or [h_pad]
    th = None
    while th is None:
        if fits(tm, h_pad):
            th = h_pad                     # weights DMA'd once for the whole call
            break
        for cand in th_cands:
            if cand <= cfg["th"] and fits(tm, cand):
                th = cand                  # stream hidden tiles, keep tm large
                break
        if th is None:
            if tm <= 16:
                th = th_cands[-1]          # smallest legal tile; give up shrinking
                break
            tm = max(16, _round_up(tm // 2, 16))
    return tm, th


# ---------------------------------------------------------------------------
# Kernel
# ---------------------------------------------------------------------------
def mlp_kernel(x_ref, wfc_ref, bfc_ref, wproj_ref, bproj_ref, o_ref, acc_ref):
    # Grid: (row tiles i ["parallel"], hidden tiles j ["arbitrary" reduction]).
    j = pl.program_id(1)

    @pl.when(j == 0)
    def _init():
        acc_ref[...] = jnp.zeros_like(acc_ref)

    # Cast x to the MXU compute dtype here (not in the wrapper): no extra
    # activation round-trip over HBM.
    x = x_ref[...].astype(wfc_ref.dtype)

    # First matmul on the MXU (f32 accumulate), bias + GELU(tanh) in f32.
    h = jnp.dot(x, wfc_ref[...], preferred_element_type=jnp.float32)
    h = h + bfc_ref[...]
    g = _gelu_tanh(h)

    # Second matmul: accumulate this hidden-tile's contribution.
    acc_ref[...] += jnp.dot(g.astype(wproj_ref.dtype), wproj_ref[...],
                            preferred_element_type=jnp.float32)

    @pl.when(j == pl.num_programs(1) - 1)
    def _finalize():
        o_ref[...] = (acc_ref[...] + bproj_ref[...]).astype(o_ref.dtype)


# ---------------------------------------------------------------------------
# Parameters (one-time prep) + wrapper
# ---------------------------------------------------------------------------
class MLPParams(NamedTuple):
    wfc: jax.Array    # (C_pad, H_pad), compute dtype
    bfc: jax.Array    # (1, H_pad), f32
    wproj: jax.Array  # (H_pad, C_pad), compute dtype
    bproj: jax.Array  # (1, C_pad), f32
    n_embd: int


def prepare_params(w_fc, b_fc, w_proj, b_proj, *, compute_dtype=jnp.bfloat16):
    """One-time weight prep (NOT per forward call): cast to the MXU compute
    dtype and zero-pad C and H to multiples of 128 so every kernel load/store
    is lane-dense.  Weights are stored (in, out), transposed vs PyTorch."""
    C, H = w_fc.shape
    c_pad, h_pad = _round_up(C, 128), _round_up(H, 128)
    wfc = jnp.pad(w_fc, ((0, c_pad - C), (0, h_pad - H))).astype(compute_dtype)
    wproj = jnp.pad(w_proj, ((0, h_pad - H), (0, c_pad - C))).astype(compute_dtype)
    bfc = jnp.pad(b_fc, (0, h_pad - H)).reshape(1, h_pad).astype(jnp.float32)
    bproj = jnp.pad(b_proj, (0, c_pad - C)).reshape(1, c_pad).astype(jnp.float32)
    return MLPParams(wfc=wfc, bfc=bfc, wproj=wproj, bproj=bproj, n_embd=C)


def mlp_forward(x, params: MLPParams):
    """x: (B, T, C) -> (B, T, C).  Equivalent to Linear(C,4C) -> GELU(tanh) -> Linear(4C,C)."""
    B, T, C = x.shape
    assert C == params.n_embd, "x channel dim does not match params"
    c_pad, h_pad = params.wfc.shape
    M = B * T

    cfg = _device_config()
    x_it = x.dtype.itemsize
    w_it = params.wfc.dtype.itemsize
    tm, th = _choose_tiles(M, c_pad, h_pad, x_it, x_it, w_it, cfg)
    m_pad = _round_up(M, tm)

    x2d = x.reshape(M, C)
    if m_pad != M or c_pad != C:
        x2d = jnp.pad(x2d, ((0, m_pad - M), (0, c_pad - C)))

    n_row_tiles = m_pad // tm
    n_hidden_tiles = h_pad // th
    weights_resident = th == h_pad
    w_reads = 1 if weights_resident else n_row_tiles

    footprint = _vmem_footprint(tm, th, c_pad, x_it, x_it, w_it)
    vmem_limit = int(min(cfg["vmem_phys"] - (4 << 20),
                         max(footprint + (8 << 20), 32 << 20)))

    cost = pl.CostEstimate(
        flops=4 * m_pad * c_pad * h_pad,          # two matmuls: 2*M*C*H each
        transcendentals=m_pad * h_pad,            # tanh in the GELU
        bytes_accessed=(m_pad * c_pad * x_it      # x in
                        + m_pad * c_pad * x_it    # out
                        + w_reads * 2 * c_pad * h_pad * w_it
                        + (h_pad + c_pad) * 4))   # biases

    out2d = pl.pallas_call(
        mlp_kernel,
        out_shape=jax.ShapeDtypeStruct((m_pad, c_pad), x.dtype),
        grid_spec=pltpu.PrefetchScalarGridSpec(
            num_scalar_prefetch=0,
            grid=(n_row_tiles, n_hidden_tiles),
            in_specs=[
                pl.BlockSpec((tm, c_pad), lambda i, j: (i, 0)),   # x row tile
                pl.BlockSpec((c_pad, th), lambda i, j: (0, j)),   # W_fc tile (const when th==H)
                pl.BlockSpec((1, th), lambda i, j: (0, j)),       # b_fc tile
                pl.BlockSpec((th, c_pad), lambda i, j: (j, 0)),   # W_proj tile
                pl.BlockSpec((1, c_pad), lambda i, j: (0, 0)),    # b_proj (tiny, resident)
            ],
            out_specs=pl.BlockSpec((tm, c_pad), lambda i, j: (i, 0)),
            scratch_shapes=[pltpu.VMEM((tm, c_pad), jnp.float32)],
        ),
        compiler_params=pltpu.CompilerParams(
            dimension_semantics=("parallel", "arbitrary"),
            vmem_limit_bytes=vmem_limit),
        cost_estimate=cost,
    )(x2d, params.wfc, params.bfc, params.wproj, params.bproj)

    if m_pad != M or c_pad != C:
        out2d = out2d[:M, :C]
    return out2d.reshape(B, T, C)


# ---------------------------------------------------------------------------
# Init + pure-JAX reference + test
# ---------------------------------------------------------------------------
def init_params(key, n_embd):
    # Shapes match nn.Linear(n_embd, 4*n_embd) / nn.Linear(4*n_embd, n_embd),
    # stored transposed (in, out) relative to PyTorch's (out, in).
    h = 4 * n_embd
    k1, k2, k3, k4 = jax.random.split(key, 4)
    s_fc = 1.0 / math.sqrt(n_embd)
    s_proj = 1.0 / math.sqrt(h)
    w_fc = jax.random.uniform(k1, (n_embd, h), jnp.float32, -s_fc, s_fc)
    b_fc = jax.random.uniform(k2, (h,), jnp.float32, -s_fc, s_fc)
    w_proj = jax.random.uniform(k3, (h, n_embd), jnp.float32, -s_proj, s_proj)
    b_proj = jax.random.uniform(k4, (n_embd,), jnp.float32, -s_proj, s_proj)
    return w_fc, b_fc, w_proj, b_proj


def _ref_forward(x, w_fc, b_fc, w_proj, b_proj, compute_dtype):
    # Pure-JAX reference with the same precision policy as the kernel.
    B, T, C = x.shape
    x2d = x.reshape(-1, C).astype(compute_dtype)
    h = jnp.dot(x2d, w_fc.astype(compute_dtype),
                preferred_element_type=jnp.float32) + b_fc.astype(jnp.float32)
    g = _gelu_tanh(h)
    o = jnp.dot(g.astype(compute_dtype), w_proj.astype(compute_dtype),
                preferred_element_type=jnp.float32) + b_proj.astype(jnp.float32)
    return o.astype(x.dtype).reshape(B, T, C)


if __name__ == "__main__":
    B, T, n_embd = 2, 8, 32  # small toy shapes; hidden = 4 * n_embd = 128
    key = jax.random.PRNGKey(0)
    kx, kp = jax.random.split(key)
    x = jax.random.normal(kx, (B, T, n_embd), dtype=jnp.float32)
    w_fc, b_fc, w_proj, b_proj = init_params(kp, n_embd)

    # 1) f32 compute path (testing path): tight check against a pure-f32 reference.
    params_f32 = prepare_params(w_fc, b_fc, w_proj, b_proj, compute_dtype=jnp.float32)
    out_f32 = jax.block_until_ready(mlp_forward(x, params_f32))
    ref_f32 = _ref_forward(x, w_fc, b_fc, w_proj, b_proj, jnp.float32)
    assert jnp.allclose(out_f32, ref_f32, atol=1e-5, rtol=1e-5), "f32 mismatch vs reference"

    # 2) bf16 compute path (default; MXU-peak on v6e/v7x).  Weight cast + pad
    #    done ONCE here, outside the forward.
    params_bf16 = prepare_params(w_fc, b_fc, w_proj, b_proj)
    out_bf16 = jax.block_until_ready(mlp_forward(x, params_bf16))
    ref_bf16 = _ref_forward(x, w_fc, b_fc, w_proj, b_proj, jnp.bfloat16)
    assert jnp.allclose(out_bf16, ref_bf16, atol=2e-2, rtol=2e-2), "bf16 mismatch vs reference"

    print("KERNEL_OK")
</pallas_src>

<mosaic_0001>
module attributes {stable_mosaic.version = 11 : i64} {
  func.func @mlp_kernel(%arg0: i32, %arg1: i32, %arg2: memref<16x128xf32, #tpu.memory_space<vmem>>, %arg3: memref<128x128xf32, #tpu.memory_space<vmem>>, %arg4: memref<1x128xf32, #tpu.memory_space<vmem>>, %arg5: memref<128x128xf32, #tpu.memory_space<vmem>>, %arg6: memref<1x128xf32, #tpu.memory_space<vmem>>, %arg7: memref<16x128xf32, #tpu.memory_space<vmem>>, %arg8: memref<16x128xf32, #tpu.memory_space<vmem>>) attributes {dimension_semantics = [#tpu.dimension_semantics<parallel>, #tpu.dimension_semantics<arbitrary>], iteration_bounds = array<i64: 1, 1>, scalar_prefetch = 0 : i64, scratch_operands = 1 : i64, tpu.core_type = #tpu.core_type<tc>, window_params = [{transform_indices = @transform_0, window_bounds = array<i64: 16, 128>}, {transform_indices = @transform_1, window_bounds = array<i64: 128, 128>}, {transform_indices = @transform_2, window_bounds = array<i64: 1, 128>}, {transform_indices = @transform_3, window_bounds = array<i64: 128, 128>}, {pipeline_mode = #tpu.pipeline_mode<synchronous>, transform_indices = @transform_4, window_bounds = array<i64: 1, 128>}, {transform_indices = @transform_5, window_bounds = array<i64: 16, 128>}]} {
    %c0_i32 = arith.constant 0 : i32
    %0 = arith.cmpi eq, %arg1, %c0_i32 : i32
    %1 = arith.extui %0 : i1 to i32
    %c0_i32_0 = arith.constant 0 : i32
    %2 = arith.cmpi ne, %1, %c0_i32_0 : i32
    scf.if %2 {
      %cst_19 = arith.constant 0.000000e+00 : f32
      %30 = vector.broadcast %cst_19 : f32 to vector<16x128xf32>
      %c0_20 = arith.constant 0 : index
      %c0_21 = arith.constant 0 : index
      %31 = vector.load %arg8[%c0_20, %c0_21] : memref<16x128xf32, #tpu.memory_space<vmem>>, vector<16x128xf32>
      tpu.vector_store %arg8[%c0_20, %c0_21], %30 {strides = array<i32>} : memref<16x128xf32, #tpu.memory_space<vmem>>, vector<16x128xf32>,
    } else {
    }
    %c0 = arith.constant 0 : index
    %c0_1 = arith.constant 0 : index
    %3 = vector.load %arg2[%c0, %c0_1] : memref<16x128xf32, #tpu.memory_space<vmem>>, vector<16x128xf32>
    %c0_2 = arith.constant 0 : index
    %c0_3 = arith.constant 0 : index
    %4 = vector.load %arg3[%c0_2, %c0_3] : memref<128x128xf32, #tpu.memory_space<vmem>>, vector<128x128xf32>
    %cst = arith.constant dense<0.000000e+00> : vector<16x128xf32>
    %5 = tpu.matmul %3, %4, %cst {dimension_numbers = #tpu.dot_dimension_numbers<[1], [0], [0], [1], [0, 0, 1, 1], [], []>} : vector<16x128xf32>, vector<128x128xf32>, vector<16x128xf32> -> vector<16x128xf32>
    %c0_4 = arith.constant 0 : index
    %c0_5 = arith.constant 0 : index
    %6 = vector.load %arg4[%c0_4, %c0_5] : memref<1x128xf32, #tpu.memory_space<vmem>>, vector<1x128xf32>
    %7 = vector.broadcast %6 : vector<1x128xf32> to vector<16x128xf32>
    %8 = arith.addf %5, %7 : vector<16x128xf32>
    %cst_6 = arith.constant 5.000000e-01 : f32
    %9 = vector.broadcast %cst_6 : f32 to vector<16x128xf32>
    %10 = arith.mulf %9, %8 : vector<16x128xf32>
    %cst_7 = arith.constant 4.471500e-02 : f32
    %11 = vector.broadcast %cst_7 : f32 to vector<16x128xf32>
    %12 = arith.mulf %11, %8 : vector<16x128xf32>
    %13 = arith.mulf %12, %8 : vector<16x128xf32>
    %14 = arith.mulf %13, %8 : vector<16x128xf32>
    %15 = arith.addf %8, %14 : vector<16x128xf32>
    %cst_8 = arith.constant 0.797884583 : f32
    %16 = vector.broadcast %cst_8 : f32 to vector<16x128xf32>
    %17 = arith.mulf %16, %15 : vector<16x128xf32>
    %18 = math.tanh %17 : vector<16x128xf32>
    %cst_9 = arith.constant 1.000000e+00 : f32
    %19 = vector.broadcast %cst_9 : f32 to vector<16x128xf32>
    %20 = arith.addf %19, %18 : vector<16x128xf32>
    %21 = arith.mulf %10, %20 : vector<16x128xf32>
    %c0_10 = arith.constant 0 : index
    %c0_11 = arith.constant 0 : index
    %22 = vector.load %arg8[%c0_10, %c0_11] : memref<16x128xf32, #tpu.memory_space<vmem>>, vector<16x128xf32>
    %c0_12 = arith.constant 0 : index
    %c0_13 = arith.constant 0 : index
    %23 = vector.load %arg5[%c0_12, %c0_13] : memref<128x128xf32, #tpu.memory_space<vmem>>, vector<128x128xf32>
    %cst_14 = arith.constant dense<0.000000e+00> : vector<16x128xf32>
    %24 = tpu.matmul %21, %23, %cst_14 {dimension_numbers = #tpu.dot_dimension_numbers<[1], [0], [0], [1], [0, 0, 1, 1], [], []>} : vector<16x128xf32>, vector<128x128xf32>, vector<16x128xf32> -> vector<16x128xf32>
    %25 = arith.addf %22, %24 : vector<16x128xf32>
    %c0_15 = arith.constant 0 : index
    %c0_16 = arith.constant 0 : index
    %26 = vector.load %arg8[%c0_15, %c0_16] : memref<16x128xf32, #tpu.memory_space<vmem>>, vector<16x128xf32>
    tpu.vector_store %arg8[%c0_15, %c0_16], %25 {strides = array<i32>} : memref<16x128xf32, #tpu.memory_space<vmem>>, vector<16x128xf32>,
    %c0_i32_17 = arith.constant 0 : i32
    %27 = arith.cmpi eq, %arg1, %c0_i32_17 : i32
    %28 = arith.extui %27 : i1 to i32
    %c0_i32_18 = arith.constant 0 : i32
    %29 = arith.cmpi ne, %28, %c0_i32_18 : i32
    scf.if %29 {
      %c0_19 = arith.constant 0 : index
      %c0_20 = arith.constant 0 : index
      %30 = vector.load %arg8[%c0_19, %c0_20] : memref<16x128xf32, #tpu.memory_space<vmem>>, vector<16x128xf32>
      %c0_21 = arith.constant 0 : index
      %c0_22 = arith.constant 0 : index
      %31 = vector.load %arg6[%c0_21, %c0_22] : memref<1x128xf32, #tpu.memory_space<vmem>>, vector<1x128xf32>
      %32 = vector.broadcast %31 : vector<1x128xf32> to vector<16x128xf32>
      %33 = arith.addf %30, %32 : vector<16x128xf32>
      %c0_23 = arith.constant 0 : index
      %c0_24 = arith.constant 0 : index
      %34 = vector.load %arg7[%c0_23, %c0_24] : memref<16x128xf32, #tpu.memory_space<vmem>>, vector<16x128xf32>
      tpu.vector_store %arg7[%c0_23, %c0_24], %33 {strides = array<i32>} : memref<16x128xf32, #tpu.memory_space<vmem>>, vector<16x128xf32>,
    } else {
    }
    return
  }
  func.func @transform_0(%arg0: i32, %arg1: i32) -> (i32, i32) {
    %c0_i32 = arith.constant 0 : i32
    %c0_i32_0 = arith.constant 0 : i32
    return %arg0, %c0_i32 : i32, i32
  }
  func.func @transform_1(%arg0: i32, %arg1: i32) -> (i32, i32) {
    %c0_i32 = arith.constant 0 : i32
    %c0_i32_0 = arith.constant 0 : i32
    return %c0_i32, %arg1 : i32, i32
  }
  func.func @transform_2(%arg0: i32, %arg1: i32) -> (i32, i32) {
    %c0_i32 = arith.constant 0 : i32
    %c0_i32_0 = arith.constant 0 : i32
    return %c0_i32, %arg1 : i32, i32
  }
  func.func @transform_3(%arg0: i32, %arg1: i32) -> (i32, i32) {
    %c0_i32 = arith.constant 0 : i32
    %c0_i32_0 = arith.constant 0 : i32
    return %arg1, %c0_i32 : i32, i32
  }
  func.func @transform_4(%arg0: i32, %arg1: i32) -> (i32, i32) {
    %c0_i32 = arith.constant 0 : i32
    %c0_i32_0 = arith.constant 0 : i32
    %c0_i32_1 = arith.constant 0 : i32
    return %c0_i32, %c0_i32_0 : i32, i32
  }
  func.func @transform_5(%arg0: i32, %arg1: i32) -> (i32, i32) {
    %c0_i32 = arith.constant 0 : i32
    %c0_i32_0 = arith.constant 0 : i32
    return %arg0, %c0_i32 : i32, i32
  }
}

</mosaic_0001>

<llo_original>
// kernel: tpu_custom_call.1
$region0: #{tpu_custom_call.1}
  #allocation0 [shape = 'u32[]', space=smem, size = 0x4, offset = 0x4, fixed_abs, tag = 'smem constant byte address 0x4 - core index']
  #allocation1 [shape = 'u32[72,128]{1,0:T(1,128)}', space=vmem, size = 0x9000, scoped, tag = 'internal scratch']
  #allocation2 [shape = 'f32[16,128]{1,0:T(8,128)}', space=vmem, size = 0x2000, scoped, tag = 'scratch operand']
  %s0 = inlined_call_operand.hbm [shape: f32[16,128], index: 0, kind: input, shape index: {}]
  %s1 = inlined_call_operand.hbm [shape: f32[128,128], index: 1, kind: input, shape index: {}]
  %s2 = inlined_call_operand.vmem [shape: f32[1,128], index: 2, kind: input, shape index: {}]
  %s3 = inlined_call_operand.hbm [shape: f32[128,128], index: 3, kind: input, shape index: {}]
  %s4 = inlined_call_operand.vmem [shape: f32[1,128], index: 4, kind: input, shape index: {}]
  %s5 = inlined_call_operand.hbm [shape: f32[16,128], index: 5, kind: output, shape index: {}]
  %s6 = sld [smem:[#allocation0]]
  $region50: #{tpu_custom_call.1} parent=0
    _
  %s8 = ssub.s32 1, %s6
  %s9 = scalar_select 0, %s8, %s6
  $region1: #{tpu_custom_call.1} parent=0
    #allocation3 [shape = 'u8[8192]{0}', space=vmem, size = 0x2000, scoped, tag = 'input window, operand 0, single buffered']
    #allocation4 [shape = 's32[1]{0}', space=sflag, size = 0x4, scoped, tag = 'scoped memory for tpu_custom_call.1']
    #allocation5 [shape = 's32[1]{0}', space=sflag, size = 0x4, scoped, tag = 'scoped memory for tpu_custom_call.1']
    #allocation6 [shape = 'u8[65536]{0}', space=vmem, size = 0x10000, scoped, tag = 'input window, operand 1, single buffered']
    #allocation7 [shape = 's32[1]{0}', space=sflag, size = 0x4, scoped, tag = 'scoped memory for tpu_custom_call.1']
    #allocation8 [shape = 'u8[65536]{0}', space=vmem, size = 0x10000, scoped, tag = 'input window, operand 3, single buffered']
    #allocation9 [shape = 'u8[8192]{0}', space=vmem, size = 0x2000, scoped, tag = 'output window, operand 0, single buffered']
    %10 = vsyncpa [#allocation4], 0
    %11 = vsyncpa [#allocation7], 0
    %12 = vsyncpa [#allocation5], 0
    // Predicated region
    $region2: #{tpu_custom_call.1} parent=1 // pred_check
      _
    $region3: #{tpu_custom_call.1} parent=1 // pred_check_branch
      %14 = sbr.rel (0) target = $region5
    $region4: #{tpu_custom_call.1} parent=1 // pred_region
      %16 = vsyncadd [#allocation4], 0
      %s17 = sshll.u32 %s0, 4
      %s18 = int_to_ptr.hbm [resolvable:$true] %s17
      %s19 = sshll.u32 [#allocation3], 4
      %s20 = int_to_ptr.vmem [resolvable:$true] %s19
      %25 = dma.hbm_to_vmem [thread:$0]  %s18, 256, %s20, [#allocation4], 128, 128, 8
    $region5: #{tpu_custom_call.1} parent=1 // pred_fallthru
      _
    // Predicated region
    $region6: #{tpu_custom_call.1} parent=1 // pred_check
      _
    $region7: #{tpu_custom_call.1} parent=1 // pred_check_branch
      %27 = sbr.rel (0) target = $region9
    $region8: #{tpu_custom_call.1} parent=1 // pred_region
      %29 = vsyncadd [#allocation7], 0
      %s30 = sshll.u32 %s1, 4
      %s31 = int_to_ptr.hbm [resolvable:$true] %s30
      %s32 = sshll.u32 [#allocation6], 4
      %s33 = int_to_ptr.vmem [resolvable:$true] %s32
      %38 = dma.hbm_to_vmem [thread:$0]  %s31, 2048, %s33, [#allocation7], 128, 128, 8
    $region9: #{tpu_custom_call.1} parent=1 // pred_fallthru
      _
    // Predicated region
    $region10: #{tpu_custom_call.1} parent=1 // pred_check
      _
    $region11: #{tpu_custom_call.1} parent=1 // pred_check_branch
      %40 = sbr.rel (0) target = $region13
    $region12: #{tpu_custom_call.1} parent=1 // pred_region
      _
    $region13: #{tpu_custom_call.1} parent=1 // pred_fallthru
      _
    // Predicated region
    $region14: #{tpu_custom_call.1} parent=1 // pred_check
      _
    $region15: #{tpu_custom_call.1} parent=1 // pred_check_branch
      %42 = sbr.rel (0) target = $region17
    $region16: #{tpu_custom_call.1} parent=1 // pred_region
      %44 = vsyncadd [#allocation7], 0
      %s45 = sshll.u32 %s3, 4
      %s46 = int_to_ptr.hbm [resolvable:$true] %s45
      %s47 = sshll.u32 [#allocation8], 4
      %s48 = int_to_ptr.vmem [resolvable:$true] %s47
      %53 = dma.hbm_to_vmem [thread:$0]  %s46, 2048, %s48, [#allocation7], 128, 128, 8
    $region17: #{tpu_custom_call.1} parent=1 // pred_fallthru
      _
    // Predicated region
    $region18: #{tpu_custom_call.1} parent=1 // pred_check
      _
    $region19: #{tpu_custom_call.1} parent=1 // pred_check_branch
      %55 = sbr.rel (0) target = $region21
    $region20: #{tpu_custom_call.1} parent=1 // pred_region
      _
    $region21: #{tpu_custom_call.1} parent=1 // pred_fallthru
      _
    // Predicated region
    $region22: #{tpu_custom_call.1} parent=1 // pred_check
      _
    $region23: #{tpu_custom_call.1} parent=1 // pred_check_branch
      %57 = sbr.rel (0) target = $region25
    $region24: #{tpu_custom_call.1} parent=1 // pred_region
      %59 = dma.done [#allocation4], 256
    $region25: #{tpu_custom_call.1} parent=1 // pred_fallthru
      _
    // Predicated region
    $region26: #{tpu_custom_call.1} parent=1 // pred_check
      _
    $region27: #{tpu_custom_call.1} parent=1 // pred_check_branch
      %61 = sbr.rel (0) target = $region29
    $region28: #{tpu_custom_call.1} parent=1 // pred_region
      %63 = dma.done [#allocation7], 2048
    $region29: #{tpu_custom_call.1} parent=1 // pred_fallthru
      _
    // Predicated region
    $region30: #{tpu_custom_call.1} parent=1 // pred_check
      _
    $region31: #{tpu_custom_call.1} parent=1 // pred_check_branch
      %65 = sbr.rel (0) target = $region33
    $region32: #{tpu_custom_call.1} parent=1 // pred_region
      %67 = dma.done [#allocation7], 2048
    $region33: #{tpu_custom_call.1} parent=1 // pred_fallthru
      _
    %p68 = scmp.eq.s32.totalorder 0, 0
    // Predicated region
    $region34: #{tpu_custom_call.1} parent=1 // pred_check
      %p69 = pneg %p68
    $region35: #{tpu_custom_call.1} parent=1 // pred_check_branch
      %71 = sbr.rel (%p69) target = $region37
    $region36: #{tpu_custom_call.1} parent=1 // pred_region
      %72 = vst [vmem:[#allocation2] sm:$0xff] 0.0
      %73 = vst [vmem:[#allocation2 + $0x8] sm:$0xff] 0.0
    $region37: #{tpu_custom_call.1} parent=1 // pred_fallthru
      _
    %v74 = vld [vmem:[#allocation3] sm:$0xff]
    %v75 = vld [vmem:[#allocation3 + $0x8] sm:$0xff]
    %v76 = vld [vmem:[#allocation6] sm:$0xff]
    %v77 = vld [vmem:[#allocation6 + $0x8] sm:$0xff]
    %v78 = vld [vmem:[#allocation6 + $0x10] sm:$0xff]
    %v79 = vld [vmem:[#allocation6 + $0x18] sm:$0xff]
    %v80 = vld [vmem:[#allocation6 + $0x20] sm:$0xff]
    %v81 = vld [vmem:[#allocation6 + $0x28] sm:$0xff]
    %v82 = vld [vmem:[#allocation6 + $0x30] sm:$0xff]
    %v83 = vld [vmem:[#allocation6 + $0x38] sm:$0xff]
    %v84 = vld [vmem:[#allocation6 + $0x40] sm:$0xff]
    %v85 = vld [vmem:[#allocation6 + $0x48] sm:$0xff]
    %v86 = vld [vmem:[#allocation6 + $0x50] sm:$0xff]
    %v87 = vld [vmem:[#allocation6 + $0x58] sm:$0xff]
    %v88 = vld [vmem:[#allocation6 + $0x60] sm:$0xff]
    %v89 = vld [vmem:[#allocation6 + $0x68] sm:$0xff]
    %v90 = vld [vmem:[#allocation6 + $0x70] sm:$0xff]
    %v91 = vld [vmem:[#allocation6 + $0x78] sm:$0xff]
    %v92 = vld [vmem:[%s2] sm:$0x1]
    %v94 = vperm.slane %v92, 0
    %96 = vmatpush.msra.mxu0 %v91
    %97 = vmatpush.msra.mxu0 %v90
    %98 = vmatpush.msra.mxu0 %v89
    %99 = vmatpush.msra.mxu0 %v88
    %100 = vmatpush.msra.mxu0 %v87
    %101 = vmatpush.msra.mxu0 %v86
    %102 = vmatpush.msra.mxu0 %v85
    %103 = vmatpush.msra.mxu0 %v84
    %104 = vmatpush.msra.mxu0 %v83
    %105 = vmatpush.msra.mxu0 %v82
    %106 = vmatpush.msra.mxu0 %v81
    %107 = vmatpush.msra.mxu0 %v80
    %108 = vmatpush.msra.mxu0 %v79
    %109 = vmatpush.msra.mxu0 %v78
    %110 = vmatpush.msra.mxu0 %v77
    %111 = vmatpush.msra.mxu0 %v76
    %112 = vmatmul.f32.gmra.mxu0 %v74
    %v113 = vpop.f32.mrf.mxu0
    %v114 = vadd.f32 %v94, %v113
    %115 = vmatmul.f32.gmra.mxu0 %v75
    %v116 = vpop.f32.mrf.mxu0
    %v117 = vadd.f32 %v94, %v116
    %118 = vdwg.mxu0
    %v119 = vmul.f32 %v114, 0.5
    %v120 = vmul.f32 %v117, 0.5
    %v121 = vmul.f32 %v114, 0.044715
    %v122 = vmul.f32 %v117, 0.044715
    %v123 = vmul.f32 %v121, %v114
    %v124 = vmul.f32 %v122, %v117
    %v125 = vmul.f32 %v123, %v114
    %v126 = vmul.f32 %v124, %v117
    %v127 = vadd.f32 %v114, %v125
    %v128 = vadd.f32 %v117, %v126
    %v129 = vmul.f32 %v127, 0.7978846
    %v130 = vmul.f32 %v128, 0.7978846
    %v131 = vtanh.pop %v129
    %v132 = vtanh.pop %v130
    %v133 = vadd.f32 %v131, 1.0
    %v134 = vadd.f32 %v132, 1.0
    %v135 = vmul.f32 %v119, %v133
    %v136 = vmul.f32 %v120, %v134
    %v137 = vld [vmem:[#allocation2] sm:$0xff]
    %v138 = vld [vmem:[#allocation2 + $0x8] sm:$0xff]
    %v139 = vld [vmem:[#allocation8] sm:$0xff]
    %v140 = vld [vmem:[#allocation8 + $0x8] sm:$0xff]
    %v141 = vld [vmem:[#allocation8 + $0x10] sm:$0xff]
    %v142 = vld [vmem:[#allocation8 + $0x18] sm:$0xff]
    %v143 = vld [vmem:[#allocation8 + $0x20] sm:$0xff]
    %v144 = vld [vmem:[#allocation8 + $0x28] sm:$0xff]
    %v145 = vld [vmem:[#allocation8 + $0x30] sm:$0xff]
    %v146 = vld [vmem:[#allocation8 + $0x38] sm:$0xff]
    %v147 = vld [vmem:[#allocation8 + $0x40] sm:$0xff]
    %v148 = vld [vmem:[#allocation8 + $0x48] sm:$0xff]
    %v149 = vld [vmem:[#allocation8 + $0x50] sm:$0xff]
    %v150 = vld [vmem:[#allocation8 + $0x58] sm:$0xff]
    %v151 = vld [vmem:[#allocation8 + $0x60] sm:$0xff]
    %v152 = vld [vmem:[#allocation8 + $0x68] sm:$0xff]
    %v153 = vld [vmem:[#allocation8 + $0x70] sm:$0xff]
    %v154 = vld [vmem:[#allocation8 + $0x78] sm:$0xff]
    %155 = vmatpush.msra.mxu0 %v154
    %156 = vmatpush.msra.mxu0 %v153
    %157 = vmatpush.msra.mxu0 %v152
    %158 = vmatpush.msra.mxu0 %v151
    %159 = vmatpush.msra.mxu0 %v150
    %160 = vmatpush.msra.mxu0 %v149
    %161 = vmatpush.msra.mxu0 %v148
    %162 = vmatpush.msra.mxu0 %v147
    %163 = vmatpush.msra.mxu0 %v146
    %164 = vmatpush.msra.mxu0 %v145
    %165 = vmatpush.msra.mxu0 %v144
    %166 = vmatpush.msra.mxu0 %v143
    %167 = vmatpush.msra.mxu0 %v142
    %168 = vmatpush.msra.mxu0 %v141
    %169 = vmatpush.msra.mxu0 %v140
    %170 = vmatpush.msra.mxu0 %v139
    %171 = vmatmul.f32.gmra.mxu0 %v135
    %v172 = vpop.f32.mrf.mxu0
    %v173 = vadd.f32 0.0, %v172
    %174 = vmatmul.f32.gmra.mxu0 %v136
    %v175 = vpop.f32.mrf.mxu0
    %v176 = vadd.f32 0.0, %v175
    %177 = vdwg.mxu0
    %v178 = vadd.f32 %v137, %v173
    %v179 = vadd.f32 %v138, %v176
    %180 = vst [vmem:[#allocation2] sm:$0xff] %v178
    %181 = vst [vmem:[#allocation2 + $0x8] sm:$0xff] %v179
    // Predicated region
    $region38: #{tpu_custom_call.1} parent=1 // pred_check
      %p182 = pneg %p68
    $region39: #{tpu_custom_call.1} parent=1 // pred_check_branch
      %184 = sbr.rel (%p182) target = $region41
    $region40: #{tpu_custom_call.1} parent=1 // pred_region
      %v185 = vld [vmem:[#allocation2] sm:$0xff]
      %v186 = vld [vmem:[#allocation2 + $0x8] sm:$0xff]
      %v187 = vld [vmem:[%s4] sm:$0x1]
      %v189 = vperm.slane %v187, 0
      %v191 = vadd.f32 %v185, %v189
      %v192 = vadd.f32 %v186, %v189
      %193 = vst [vmem:[#allocation9] sm:$0xff] %v191
      %194 = vst [vmem:[#allocation9 + $0x8] sm:$0xff] %v192
    $region41: #{tpu_custom_call.1} parent=1 // pred_fallthru
      _
    // Predicated region
    $region42: #{tpu_custom_call.1} parent=1 // pred_check
      _
    $region43: #{tpu_custom_call.1} parent=1 // pred_check_branch
      %196 = sbr.rel (0) target = $region45
    $region44: #{tpu_custom_call.1} parent=1 // pred_region
      %198 = vsyncadd [#allocation5], 0
      %s199 = sshll.u32 [#allocation9], 4
      %s200 = int_to_ptr.vmem [resolvable:$true] %s199
      %s201 = sshll.u32 %s5, 4
      %s202 = int_to_ptr.hbm [resolvable:$true] %s201
      %207 = dma.vmem_to_hbm [thread:$0]  %s200, 256, %s202, [#allocation5], 128, 128, 8
    $region45: #{tpu_custom_call.1} parent=1 // pred_fallthru
      _
    // Predicated region
    $region46: #{tpu_custom_call.1} parent=1 // pred_check
      _
    $region47: #{tpu_custom_call.1} parent=1 // pred_check_branch
      %209 = sbr.rel (0) target = $region49
    $region48: #{tpu_custom_call.1} parent=1 // pred_region
      %211 = dma.done [#allocation5], 256
    $region49: #{tpu_custom_call.1} parent=1 // pred_fallthru
      _
    %212 = vsyncpa [#allocation4], 1
    %213 = vsyncpa [#allocation7], 1
    %214 = vsyncpa [#allocation5], 1

</llo_original>
